<compile_context>
chip_gen: v7x
topology: tpu7x:2x2x1
jax: 0.10.0
libtpu: 0.0.40
codegen_flags: <defaults>
</compile_context>

<pallas_src>
import functools

import jax
import jax.numpy as jnp
from jax.experimental import pallas as pl
from jax.experimental.pallas import tpu as pltpu

EPS = 1e-6  # matches F.pairwise_distance default eps


def _round_up(x: int, m: int) -> int:
    return ((x + m - 1) // m) * m


def _vmem_budget_bytes() -> int:
    """Half of the chip's physical VMEM (fallback: 32 MiB)."""
    try:
        return int(pltpu.get_tpu_info().vmem_capacity_bytes) // 2
    except Exception:
        return 32 * 1024 * 1024


def _contrastive_kernel(o1_ref, o2_ref, label_ref, out_ref, *,
                        margin, n_valid, tile_n, mask_rows):
    """One batch tile: per-row contrastive term, reduced to a partial sum."""
    o1 = o1_ref[...].astype(jnp.float32)          # (TILE_N, D)
    o2 = o2_ref[...].astype(jnp.float32)          # (TILE_N, D)
    label = label_ref[...]                        # (TILE_N, 1) f32

    # F.pairwise_distance: ||o1 - o2 + eps||_2 along the feature axis.
    diff = o1 - o2 + EPS                                      # VPU
    dist_sq = jnp.sum(diff * diff, axis=-1, keepdims=True)    # (TILE_N, 1) XLU
    dist = jnp.sqrt(dist_sq)                                  # EUP
    hinge = jnp.maximum(margin - dist, 0.0)
    per_row = (1.0 - label) * dist_sq + label * (hinge * hinge)

    if mask_rows:  # static Python bool: only emitted when N was padded
        row = (jax.lax.broadcasted_iota(jnp.int32, (tile_n, 1), 0)
               + pl.program_id(0) * tile_n)
        per_row = jnp.where(row < n_valid, per_row, 0.0)

    # Partial SUM for this tile; the divide by the true N happens once in the
    # wrapper (no per-tile mean / read-modify-write).
    out_ref[0, 0] = jnp.sum(per_row)


def contrastive_loss(output1, output2, label, *, margin=2.0, tile_n=None):
    """output1/output2: (N, D); label: (N,) or (N, 1) floats/ints in {0, 1}."""
    n, d = output1.shape
    itemsize = jnp.dtype(output1.dtype).itemsize
    label2d = jnp.reshape(label, (n, 1)).astype(jnp.float32)

    budget = _vmem_budget_bytes()
    if tile_n is None:
        # Double-buffered VMEM footprint per batch row:
        #   2 embedding inputs x 2 pipeline buffers x D x itemsize
        # + label block padded to 128 lanes x 2 buffers.
        bytes_per_row = 2 * 2 * d * itemsize + 2 * 128 * 4
        tile_n = max(8, min(budget // bytes_per_row, 4096))
    tile_n = _round_up(max(int(tile_n), 8), 8)
    tile_n = min(tile_n, _round_up(n, 8))

    n_pad = _round_up(n, tile_n)
    num_tiles = n_pad // tile_n
    if n_pad != n:
        pad = ((0, n_pad - n), (0, 0))
        output1 = jnp.pad(output1, pad)
        output2 = jnp.pad(output2, pad)
        label2d = jnp.pad(label2d, pad)

    kernel = functools.partial(
        _contrastive_kernel,
        margin=float(margin), n_valid=n, tile_n=tile_n,
        mask_rows=(n_pad != n),
    )

    partials = pl.pallas_call(
        kernel,
        out_shape=jax.ShapeDtypeStruct((num_tiles, 1), jnp.float32),
        grid_spec=pltpu.PrefetchScalarGridSpec(
            num_scalar_prefetch=0,
            grid=(num_tiles,),
            in_specs=[
                pl.BlockSpec((tile_n, d), lambda i: (i, 0)),
                pl.BlockSpec((tile_n, d), lambda i: (i, 0)),
                pl.BlockSpec((tile_n, 1), lambda i: (i, 0)),
            ],
            out_specs=pl.BlockSpec((1, 1), lambda i: (i, 0),
                                   memory_space=pltpu.SMEM),
        ),
        compiler_params=pltpu.CompilerParams(
            dimension_semantics=("parallel",),  # independent tiles -> multi-TC
            vmem_limit_bytes=int(budget),
        ),
    )(output1, output2, label2d)

    return jnp.sum(partials) / n


def _reference(output1, output2, label, margin=2.0):
    # Pure-JAX reference mirroring the PyTorch module.
    diff = output1.astype(jnp.float32) - output2.astype(jnp.float32) + EPS
    dist = jnp.sqrt(jnp.sum(diff * diff, axis=-1))
    hinge = jnp.clip(margin - dist, 0.0, None)
    return jnp.mean((1.0 - label) * dist ** 2 + label * hinge ** 2)


if __name__ == "__main__":
    key = jax.random.PRNGKey(0)
    k1, k2, k3 = jax.random.split(key, 3)

    # Small but lane-dense shapes: 50 pairs of 128-dim embeddings.  N=50 is
    # deliberately ragged to exercise the padded / masked last tile.
    N, D = 50, 128
    output1 = jax.random.normal(k1, (N, D), dtype=jnp.float32)
    output2 = jax.random.normal(k2, (N, D), dtype=jnp.float32)
    label = jax.random.bernoulli(k3, 0.5, (N,)).astype(jnp.float32)

    ref = _reference(output1, output2, label)

    # 1) auto (VMEM-budgeted) tile size.
    loss = contrastive_loss(output1, output2, label)
    jax.block_until_ready(loss)
    assert jnp.allclose(loss, ref, rtol=1e-5, atol=1e-5), (loss, ref)

    # 2) forced small tile -> multi-step pipelined grid + ragged-row masking.
    loss_tiled = contrastive_loss(output1, output2, label, tile_n=16)
    jax.block_until_ready(loss_tiled)
    assert jnp.allclose(loss_tiled, ref, rtol=1e-5, atol=1e-5), (loss_tiled, ref)

    print("KERNEL_OK")
</pallas_src>

<mosaic_0001>
module attributes {stable_mosaic.version = 11 : i64} {
  func.func @_contrastive_kernel(%arg0: i32, %arg1: memref<56x128xf32, #tpu.memory_space<vmem>>, %arg2: memref<56x128xf32, #tpu.memory_space<vmem>>, %arg3: memref<56x1xf32, #tpu.memory_space<vmem>>, %arg4: memref<1x1xf32, #tpu.memory_space<smem>>) attributes {dimension_semantics = [#tpu.dimension_semantics<parallel>], iteration_bounds = array<i64: 1>, scalar_prefetch = 0 : i64, scratch_operands = 0 : i64, tpu.core_type = #tpu.core_type<tc>, window_params = [{transform_indices = @transform_0, window_bounds = array<i64: 56, 128>}, {transform_indices = @transform_1, window_bounds = array<i64: 56, 128>}, {transform_indices = @transform_2, window_bounds = array<i64: 56, 1>}, {transform_indices = @transform_3, window_bounds = array<i64: 1, 1>}]} {
    %c0 = arith.constant 0 : index
    %c0_0 = arith.constant 0 : index
    %0 = vector.load %arg1[%c0, %c0_0] : memref<56x128xf32, #tpu.memory_space<vmem>>, vector<56x128xf32>
    %c0_1 = arith.constant 0 : index
    %c0_2 = arith.constant 0 : index
    %1 = vector.load %arg2[%c0_1, %c0_2] : memref<56x128xf32, #tpu.memory_space<vmem>>, vector<56x128xf32>
    %c0_3 = arith.constant 0 : index
    %c0_4 = arith.constant 0 : index
    %2 = vector.load %arg3[%c0_3, %c0_4] : memref<56x1xf32, #tpu.memory_space<vmem>>, vector<56x1xf32>
    %3 = arith.subf %0, %1 : vector<56x128xf32>
    %cst = arith.constant 9.99999997E-7 : f32
    %4 = vector.broadcast %cst : f32 to vector<56x128xf32>
    %5 = arith.addf %3, %4 : vector<56x128xf32>
    %6 = arith.mulf %5, %5 : vector<56x128xf32>
    %cst_5 = arith.constant dense<0.000000e+00> : vector<56xf32>
    %7 = vector.multi_reduction <add>, %6, %cst_5 [1] : vector<56x128xf32> to vector<56xf32>
    %8 = vector.shape_cast %7 : vector<56xf32> to vector<56x1xf32>
    %9 = math.sqrt %8 : vector<56x1xf32>
    %cst_6 = arith.constant 2.000000e+00 : f32
    %10 = vector.broadcast %cst_6 : f32 to vector<56x1xf32>
    %11 = arith.subf %10, %9 : vector<56x1xf32>
    %cst_7 = arith.constant 0.000000e+00 : f32
    %12 = vector.broadcast %cst_7 : f32 to vector<56x1xf32>
    %13 = arith.maximumf %11, %12 : vector<56x1xf32>
    %cst_8 = arith.constant 1.000000e+00 : f32
    %14 = vector.broadcast %cst_8 : f32 to vector<56x1xf32>
    %15 = arith.subf %14, %2 : vector<56x1xf32>
    %16 = arith.mulf %15, %8 : vector<56x1xf32>
    %17 = arith.mulf %13, %13 : vector<56x1xf32>
    %18 = arith.mulf %2, %17 : vector<56x1xf32>
    %19 = arith.addf %16, %18 : vector<56x1xf32>
    %20 = tpu.iota {dimensions = array<i32: 0>} : vector<56x1xi32>
    %c56_i32 = arith.constant 56 : i32
    %21 = arith.muli %arg0, %c56_i32 : i32
    %22 = vector.broadcast %21 : i32 to vector<56x1xi32>
    %23 = arith.addi %20, %22 : vector<56x1xi32>
    %c50_i32 = arith.constant 50 : i32
    %24 = vector.broadcast %c50_i32 : i32 to vector<56x1xi32>
    %25 = arith.cmpi slt, %23, %24 : vector<56x1xi32>
    %cst_9 = arith.constant 0.000000e+00 : f32
    %26 = vector.broadcast %cst_9 : f32 to vector<56x1xf32>
    %27 = arith.select %25, %19, %26 : vector<56x1xi1>, vector<56x1xf32>
    %28 = vector.shape_cast %27 : vector<56x1xf32> to vector<1x56x1xf32>
    %cst_10 = arith.constant dense<0.000000e+00> : vector<1xf32>
    %29 = vector.multi_reduction <add>, %28, %cst_10 [1, 2] : vector<1x56x1xf32> to vector<1xf32>
    %30 = vector.shape_cast %29 : vector<1xf32> to vector<1x1x1xf32>
    %31 = vector.extract %30[0, 0, 0] : f32 from vector<1x1x1xf32>
    %c0_11 = arith.constant 0 : index
    %c0_12 = arith.constant 0 : index
    %32 = memref.load %arg4[%c0_11, %c0_12] : memref<1x1xf32, #tpu.memory_space<smem>>
    memref.store %31, %arg4[%c0_11, %c0_12] : memref<1x1xf32, #tpu.memory_space<smem>>
    return
  }
  func.func @transform_0(%arg0: i32) -> (i32, i32) {
    %c0_i32 = arith.constant 0 : i32
    %c0_i32_0 = arith.constant 0 : i32
    return %arg0, %c0_i32 : i32, i32
  }
  func.func @transform_1(%arg0: i32) -> (i32, i32) {
    %c0_i32 = arith.constant 0 : i32
    %c0_i32_0 = arith.constant 0 : i32
    return %arg0, %c0_i32 : i32, i32
  }
  func.func @transform_2(%arg0: i32) -> (i32, i32) {
    %c0_i32 = arith.constant 0 : i32
    %c0_i32_0 = arith.constant 0 : i32
    return %arg0, %c0_i32 : i32, i32
  }
  func.func @transform_3(%arg0: i32) -> (i32, i32) {
    %c0_i32 = arith.constant 0 : i32
    %c0_i32_0 = arith.constant 0 : i32
    return %arg0, %c0_i32 : i32, i32
  }
}

</mosaic_0001>

<llo_original>
// kernel: tpu_custom_call.1
$region0: #{tpu_custom_call.1}
  #allocation0 [shape = 'u32[]', space=smem, size = 0x4, offset = 0x4, fixed_abs, tag = 'smem constant byte address 0x4 - core index']
  #allocation1 [shape = 'u32[144,128]{1,0:T(1,128)}', space=vmem, size = 0x12000, scoped, tag = 'internal scratch']
  %s0 = inlined_call_operand.vmem [shape: f32[56,128], index: 0, kind: input, shape index: {}]
  %s1 = inlined_call_operand.hbm [shape: f32[56,128], index: 1, kind: input, shape index: {}]
  %s2 = inlined_call_operand.vmem [shape: f32[56,1], index: 2, kind: input, shape index: {}]
  %s3 = inlined_call_operand.hbm [shape: f32[1,1], index: 3, kind: output, shape index: {}]
  %s4 = sld [smem:[#allocation0]]
  $region26: #{tpu_custom_call.1} parent=0
    _
  %s6 = ssub.s32 1, %s4
  %s7 = scalar_select 0, %s6, %s4
  $region1: #{tpu_custom_call.1} parent=0
    #allocation2 [shape = 'u8[28672]{0}', space=vmem, size = 0x7000, scoped, tag = 'input window, operand 1, single buffered']
    #allocation3 [shape = 's32[1]{0}', space=sflag, size = 0x4, scoped, tag = 'scoped memory for tpu_custom_call.1']
    #allocation4 [shape = 's32[1]{0}', space=sflag, size = 0x4, scoped, tag = 'scoped memory for tpu_custom_call.1']
    #allocation5 [shape = 'u8[512]{0}', space=smem, size = 0x200, scoped, tag = 'output window, operand 0, single buffered']
    %8 = vsyncpa [#allocation3], 0
    %9 = vsyncpa [#allocation4], 0
    // Predicated region
    $region2: #{tpu_custom_call.1} parent=1 // pred_check
      _
    $region3: #{tpu_custom_call.1} parent=1 // pred_check_branch
      %11 = sbr.rel (0) target = $region5
    $region4: #{tpu_custom_call.1} parent=1 // pred_region
      _
    $region5: #{tpu_custom_call.1} parent=1 // pred_fallthru
      _
    // Predicated region
    $region6: #{tpu_custom_call.1} parent=1 // pred_check
      _
    $region7: #{tpu_custom_call.1} parent=1 // pred_check_branch
      %13 = sbr.rel (0) target = $region9
    $region8: #{tpu_custom_call.1} parent=1 // pred_region
      %s15 = ssub.s32 896, 896
      %16 = vsyncadd [#allocation3], %s15
      %s17 = sshll.u32 [#allocation2], 4
      %s18 = int_to_ptr.vmem [resolvable:$true] %s17
      %23 = dma.hbm_to_vmem [thread:$0]  %s1, 896, %s18, [#allocation3], 128, 128, 8
    $region9: #{tpu_custom_call.1} parent=1 // pred_fallthru
      _
    // Predicated region
    $region10: #{tpu_custom_call.1} parent=1 // pred_check
      _
    $region11: #{tpu_custom_call.1} parent=1 // pred_check_branch
      %25 = sbr.rel (0) target = $region13
    $region12: #{tpu_custom_call.1} parent=1 // pred_region
      _
    $region13: #{tpu_custom_call.1} parent=1 // pred_fallthru
      _
    // Predicated region
    $region14: #{tpu_custom_call.1} parent=1 // pred_check
      _
    $region15: #{tpu_custom_call.1} parent=1 // pred_check_branch
      %27 = sbr.rel (0) target = $region17
    $region16: #{tpu_custom_call.1} parent=1 // pred_region
      %28 = dma.done [#allocation3], 896
    $region17: #{tpu_custom_call.1} parent=1 // pred_fallthru
      _
    %v29 = vld [vmem:[%s0] sm:$0xff]
    %v30 = vld [vmem:[%s0 + $0x8] sm:$0xff]
    %v31 = vld [vmem:[%s0 + $0x10] sm:$0xff]
    %v32 = vld [vmem:[%s0 + $0x18] sm:$0xff]
    %v33 = vld [vmem:[%s0 + $0x20] sm:$0xff]
    %v34 = vld [vmem:[%s0 + $0x28] sm:$0xff]
    %v35 = vld [vmem:[%s0 + $0x30] sm:$0xff]
    %v36 = vld [vmem:[#allocation2] sm:$0xff]
    %v37 = vld [vmem:[#allocation2 + $0x8] sm:$0xff]
    %v38 = vld [vmem:[#allocation2 + $0x10] sm:$0xff]
    %v39 = vld [vmem:[#allocation2 + $0x18] sm:$0xff]
    %v40 = vld [vmem:[#allocation2 + $0x20] sm:$0xff]
    %v41 = vld [vmem:[#allocation2 + $0x28] sm:$0xff]
    %v42 = vld [vmem:[#allocation2 + $0x30] sm:$0xff]
    %v43 = vld [vmem:[%s2] sm:$0xff]
    %v44 = vld [vmem:[%s2 + $0x8] sm:$0xff]
    %v45 = vld [vmem:[%s2 + $0x10] sm:$0xff]
    %v46 = vld [vmem:[%s2 + $0x18] sm:$0xff]
    %v47 = vld [vmem:[%s2 + $0x20] sm:$0xff]
    %v48 = vld [vmem:[%s2 + $0x28] sm:$0xff]
    %v49 = vld [vmem:[%s2 + $0x30] sm:$0xff]
    %v50 = vsub.f32 %v29, %v36
    %v51 = vsub.f32 %v30, %v37
    %v52 = vsub.f32 %v31, %v38
    %v53 = vsub.f32 %v32, %v39
    %v54 = vsub.f32 %v33, %v40
    %v55 = vsub.f32 %v34, %v41
    %v56 = vsub.f32 %v35, %v42
    %v57 = vadd.f32 %v50, 1e-06
    %v58 = vadd.f32 %v51, 1e-06
    %v59 = vadd.f32 %v52, 1e-06
    %v60 = vadd.f32 %v53, 1e-06
    %v61 = vadd.f32 %v54, 1e-06
    %v62 = vadd.f32 %v55, 1e-06
    %v63 = vadd.f32 %v56, 1e-06
    %v64 = vmul.f32 %v57, %v57
    %v65 = vmul.f32 %v58, %v58
    %v66 = vmul.f32 %v59, %v59
    %v67 = vmul.f32 %v60, %v60
    %v68 = vmul.f32 %v61, %v61
    %v69 = vmul.f32 %v62, %v62
    %v70 = vmul.f32 %v63, %v63
    %71 = vadd.xlane.f32.xlu0 %v64
    %v72 = vpop.xlane.xlu0 %71
    %73 = vadd.xlane.f32.xlu0 %v65
    %v74 = vpop.xlane.xlu0 %73
    %75 = vadd.xlane.f32.xlu0 %v66
    %v76 = vpop.xlane.xlu0 %75
    %77 = vadd.xlane.f32.xlu0 %v67
    %v78 = vpop.xlane.xlu0 %77
    %79 = vadd.xlane.f32.xlu0 %v68
    %v80 = vpop.xlane.xlu0 %79
    %81 = vadd.xlane.f32.xlu0 %v69
    %v82 = vpop.xlane.xlu0 %81
    %83 = vadd.xlane.f32.xlu0 %v70
    %v84 = vpop.xlane.xlu0 %83
    %v85 = vrsqrt.pop %v72
    %v86 = vmul.f32 %v72, %v85
    %vm87 = vcmp.eq.f32.partialorder %v72, inf
    %v88 = vsel %vm87, %v72, %v86
    %vm89 = vcmp.eq.f32.partialorder %v72, 0.0
    %v90 = vand.u32 %v72, 2147483648
    %v91 = vsel %vm89, %v90, %v88
    %v92 = vrsqrt.pop %v74
    %v93 = vmul.f32 %v74, %v92
    %vm94 = vcmp.eq.f32.partialorder %v74, inf
    %v95 = vsel %vm94, %v74, %v93
    %vm96 = vcmp.eq.f32.partialorder %v74, 0.0
    %v97 = vand.u32 %v74, 2147483648
    %v98 = vsel %vm96, %v97, %v95
    %v99 = vrsqrt.pop %v76
    %v100 = vmul.f32 %v76, %v99
    %vm101 = vcmp.eq.f32.partialorder %v76, inf
    %v102 = vsel %vm101, %v76, %v100
    %vm103 = vcmp.eq.f32.partialorder %v76, 0.0
    %v104 = vand.u32 %v76, 2147483648
    %v105 = vsel %vm103, %v104, %v102
    %v106 = vrsqrt.pop %v78
    %v107 = vmul.f32 %v78, %v106
    %vm108 = vcmp.eq.f32.partialorder %v78, inf
    %v109 = vsel %vm108, %v78, %v107
    %vm110 = vcmp.eq.f32.partialorder %v78, 0.0
    %v111 = vand.u32 %v78, 2147483648
    %v112 = vsel %vm110, %v111, %v109
    %v113 = vrsqrt.pop %v80
    %v114 = vmul.f32 %v80, %v113
    %vm115 = vcmp.eq.f32.partialorder %v80, inf
    %v116 = vsel %vm115, %v80, %v114
    %vm117 = vcmp.eq.f32.partialorder %v80, 0.0
    %v118 = vand.u32 %v80, 2147483648
    %v119 = vsel %vm117, %v118, %v116
    %v120 = vrsqrt.pop %v82
    %v121 = vmul.f32 %v82, %v120
    %vm122 = vcmp.eq.f32.partialorder %v82, inf
    %v123 = vsel %vm122, %v82, %v121
    %vm124 = vcmp.eq.f32.partialorder %v82, 0.0
    %v125 = vand.u32 %v82, 2147483648
    %v126 = vsel %vm124, %v125, %v123
    %v127 = vrsqrt.pop %v84
    %v128 = vmul.f32 %v84, %v127
    %vm129 = vcmp.eq.f32.partialorder %v84, inf
    %v130 = vsel %vm129, %v84, %v128
    %vm131 = vcmp.eq.f32.partialorder %v84, 0.0
    %v132 = vand.u32 %v84, 2147483648
    %v133 = vsel %vm131, %v132, %v130
    %v134 = vsub.f32 2.0, %v91
    %v135 = vsub.f32 2.0, %v98
    %v136 = vsub.f32 2.0, %v105
    %v137 = vsub.f32 2.0, %v112
    %v138 = vsub.f32 2.0, %v119
    %v139 = vsub.f32 2.0, %v126
    %v140 = vsub.f32 2.0, %v133
    %v141 = vmax.f32 %v134, 0.0
    %v142 = vmax.f32 %v135, 0.0
    %v143 = vmax.f32 %v136, 0.0
    %v144 = vmax.f32 %v137, 0.0
    %v145 = vmax.f32 %v138, 0.0
    %v146 = vmax.f32 %v139, 0.0
    %v147 = vmax.f32 %v140, 0.0
    %v148 = vsub.f32 1.0, %v43
    %v149 = vsub.f32 1.0, %v44
    %v150 = vsub.f32 1.0, %v45
    %v151 = vsub.f32 1.0, %v46
    %v152 = vsub.f32 1.0, %v47
    %v153 = vsub.f32 1.0, %v48
    %v154 = vsub.f32 1.0, %v49
    %v155 = vmul.f32 %v148, %v72
    %v156 = vmul.f32 %v149, %v74
    %v157 = vmul.f32 %v150, %v76
    %v158 = vmul.f32 %v151, %v78
    %v159 = vmul.f32 %v152, %v80
    %v160 = vmul.f32 %v153, %v82
    %v161 = vmul.f32 %v154, %v84
    %v162 = vmul.f32 %v141, %v141
    %v163 = vmul.f32 %v142, %v142
    %v164 = vmul.f32 %v143, %v143
    %v165 = vmul.f32 %v144, %v144
    %v166 = vmul.f32 %v145, %v145
    %v167 = vmul.f32 %v146, %v146
    %v168 = vmul.f32 %v147, %v147
    %v169 = vmul.f32 %v43, %v162
    %v170 = vmul.f32 %v44, %v163
    %v171 = vmul.f32 %v45, %v164
    %v172 = vmul.f32 %v46, %v165
    %v173 = vmul.f32 %v47, %v166
    %v174 = vmul.f32 %v48, %v167
    %v175 = vmul.f32 %v49, %v168
    %v176 = vadd.f32 %v155, %v169
    %v177 = vadd.f32 %v156, %v170
    %v178 = vadd.f32 %v157, %v171
    %v179 = vadd.f32 %v158, %v172
    %v180 = vadd.f32 %v159, %v173
    %v181 = vadd.f32 %v160, %v174
    %v182 = vadd.f32 %v161, %v175
    %v183 = vlaneseq
    %v184 = vshrl.u32 %v183, 7
    %v185 = vadd.s32 %v184, 8
    %v186 = vadd.s32 %v184, 16
    %v187 = vadd.s32 %v184, 24
    %v188 = vadd.s32 %v184, 32
    %v189 = vadd.s32 %v184, 40
    %v190 = vadd.s32 %v184, 48
    %s191 = smul.u32 0, 56
    %v192 = vstv %s191
    %v193 = vadd.s32 %v184, %v192
    %v194 = vadd.s32 %v185, %v192
    %v195 = vadd.s32 %v186, %v192
    %v196 = vadd.s32 %v187, %v192
    %v197 = vadd.s32 %v188, %v192
    %v198 = vadd.s32 %v189, %v192
    %v199 = vadd.s32 %v190, %v192
    %vm200 = vcmp.lt.s32.totalorder %v193, 50
    %vm201 = vcmp.lt.s32.totalorder %v194, 50
    %vm202 = vcmp.lt.s32.totalorder %v195, 50
    %vm203 = vcmp.lt.s32.totalorder %v196, 50
    %vm204 = vcmp.lt.s32.totalorder %v197, 50
    %vm205 = vcmp.lt.s32.totalorder %v198, 50
    %vm206 = vcmp.lt.s32.totalorder %v199, 50
    %v207 = vsel %vm200, %v176, 0.0
    %v208 = vsel %vm201, %v177, 0.0
    %v209 = vsel %vm202, %v178, 0.0
    %v210 = vsel %vm203, %v179, 0.0
    %v211 = vsel %vm204, %v180, 0.0
    %v212 = vsel %vm205, %v181, 0.0
    %v213 = vsel %vm206, %v182, 0.0
    %vm214 = vcmask 7168
    %v215 = vsel %vm214, %v207, 0.0
    %v216 = vsel %vm214, %v208, 0.0
    %v217 = vadd.f32 %v215, %v216
    %v218 = vsel %vm214, %v209, 0.0
    %v219 = vadd.f32 %v217, %v218
    %v220 = vsel %vm214, %v210, 0.0
    %v221 = vadd.f32 %v219, %v220
    %v222 = vsel %vm214, %v211, 0.0
    %v223 = vadd.f32 %v221, %v222
    %v224 = vsel %vm214, %v212, 0.0
    %v225 = vadd.f32 %v223, %v224
    %v226 = vsel %vm214, %v213, 0.0
    %v227 = vadd.f32 %v225, %v226
    %228 = vadd.xlane.f32.xlu0 %v227
    %v229 = vpop.xlane.xlu0 %228
    %v230 = vrot.slane %v229, 4
    %v231 = vadd.f32 %v229, %v230
    %v232 = vrot.slane %v231, 2
    %v233 = vadd.f32 %v231, %v232
    %v234 = vrot.slane %v233, 1
    %v235 = vadd.f32 %v233, %v234
    %s236 = vtos %v235
    %s237 = scalar_lea.smem [#allocation5], 0
    %238 = sst [smem:[%s237]] %s236
    // Predicated region
    $region18: #{tpu_custom_call.1} parent=1 // pred_check
      _
    $region19: #{tpu_custom_call.1} parent=1 // pred_check_branch
      %240 = sbr.rel (0) target = $region21
    $region20: #{tpu_custom_call.1} parent=1 // pred_region
      %s242 = ssub.s32 16, 16
      %243 = vsyncadd [#allocation4], %s242
      %246 = dma.smem_to_hbm [#allocation5], 16, %s3, [#allocation4]
    $region21: #{tpu_custom_call.1} parent=1 // pred_fallthru
      _
    // Predicated region
    $region22: #{tpu_custom_call.1} parent=1 // pred_check
      _
    $region23: #{tpu_custom_call.1} parent=1 // pred_check_branch
      %248 = sbr.rel (0) target = $region25
    $region24: #{tpu_custom_call.1} parent=1 // pred_region
      %249 = dma.done [#allocation4], 16
    $region25: #{tpu_custom_call.1} parent=1 // pred_fallthru
      _
    %250 = sfence
    %251 = vsyncpa [#allocation3], 1
    %252 = vsyncpa [#allocation4], 1

</llo_original>
